<compile_context>
chip_gen: v7x
topology: tpu7x:2x2x1
jax: 0.10.0
libtpu: 0.0.40
codegen_flags: <defaults>
</compile_context>

<pallas_src>
import functools

import jax
import jax.numpy as jnp
from jax.experimental import pallas as pl
from jax.experimental.pallas import tpu as pltpu


def _round_up(x, m):
    return ((x + m - 1) // m) * m


def fold_dueling_head(wv, bv, wa, ba):
    """Fold value head + dueling mean into one (H, A) weight and (1, A) bias."""
    wq = wv + wa - jnp.mean(wa, axis=1, keepdims=True)   # (H, A)
    bq = bv + ba - jnp.mean(ba, axis=1, keepdims=True)   # (1, A)
    return wq, bq


# --------------------------- kernels ---------------------------------------

def dueling_kernel(x_ref, w1_ref, b1_ref, wq_ref, bq_ref, q_ref, *,
                   matmul_dtype, vpu_first_layer):
    """Batch-major kernel: x (TB,F) -> q (TB,A)."""
    x = x_ref[...]                                                   # (TB, F) f32
    if vpu_first_layer:
        # K (= n_features) is tiny: a handful of f32 VPU broadcast-FMAs beat an
        # MXU pass with K=4 and skip the bf16 casts for this layer.
        h = b1_ref[...]                                              # (1, H) f32
        for k in range(x.shape[-1]):                                 # static, F small
            h = h + x[:, k:k + 1] * w1_ref[k:k + 1, :]               # (TB, H)
    else:
        h = jnp.dot(x.astype(matmul_dtype), w1_ref[...],
                    preferred_element_type=jnp.float32) + b1_ref[...]
    h = jnp.maximum(h, 0.0)
    # Folded dueling head (value + advantage - mean already folded into wq/bq).
    q = jnp.dot(h.astype(matmul_dtype), wq_ref[...],
                preferred_element_type=jnp.float32) + bq_ref[...]    # (TB, A) f32
    q_ref[...] = q.astype(q_ref.dtype)


def dueling_kernel_t(xt_ref, w1t_ref, b1t_ref, wqt_ref, bqt_ref, qt_ref, *,
                     matmul_dtype):
    """Transposed-space kernel: x^T (F,TB) -> q^T (A,TB); lane-dense stores."""
    xt = xt_ref[...].astype(matmul_dtype)                            # (F, TB)
    h = jnp.dot(w1t_ref[...], xt,
                preferred_element_type=jnp.float32) + b1t_ref[...]   # (H, TB) f32
    h = jnp.maximum(h, 0.0)
    q = jnp.dot(wqt_ref[...], h.astype(matmul_dtype),
                preferred_element_type=jnp.float32) + bqt_ref[...]   # (A, TB) f32
    qt_ref[...] = q.astype(qt_ref.dtype)


# --------------------------- wrapper ---------------------------------------

def _choose_tile_b(batch, gran, max_tile=512):
    """Batch tile: single tile for tiny batches, two even tiles up to 2*512
    (both v7x TensorCores get work), 512-row stream beyond that."""
    bp = _round_up(batch, gran)
    if bp <= gran:
        return bp
    if bp <= 2 * max_tile:
        return _round_up(pl.cdiv(bp, 2), gran)
    return max_tile


def _resident(block_shape):
    # Constant index map -> the block never changes across grid steps; a single
    # buffer is enough (drops the pointless double buffer for weights/biases).
    return pl.BlockSpec(block_shape, lambda i: (0, 0),
                        pipeline_mode=pl.Buffered(1))


def dueling_forward(x, w1, b1, wv, bv, wa, ba, *, tile_b=None,
                    matmul_dtype=jnp.bfloat16, transposed_out=None):
    """q = value + (advantage - mean(advantage)); x:(B,F), weights in (in,out)."""
    B, F = x.shape
    H = w1.shape[1]
    A = wa.shape[1]
    out_dtype = x.dtype

    # Fold the head once per call (O(H*A), trivial). Note: casting the folded
    # head to bf16 applies rounding *after* the Wa - mean(Wa) cancellation, so
    # Q-values differ from exact f32 by bf16-level noise.
    wq, bq = fold_dueling_head(wv, bv, wa, ba)

    if transposed_out is None:
        # Lane-dense (transposed) output only pays once the batch is big enough
        # to amortize the wrapper-side transposes; skip it for small batches.
        transposed_out = B >= 256

    if transposed_out:
        gran = 128                      # out block last dim must be 128-aligned
        if tile_b is None:
            tile_b = _choose_tile_b(B, gran)
        assert tile_b % gran == 0, "transposed path needs tile_b % 128 == 0"
        b_pad = _round_up(B, tile_b)
        grid = (b_pad // tile_b,)

        xt = x.T                                                     # (F, B)
        if b_pad != B:
            xt = jnp.pad(xt, ((0, 0), (0, b_pad - B)))
        w1t = w1.T.astype(matmul_dtype)                              # (H, F)
        wqt = wq.T.astype(matmul_dtype)                              # (A, H)
        b1t = b1.T.astype(jnp.float32)                               # (H, 1)
        bqt = bq.T.astype(jnp.float32)                               # (A, 1)

        qt = pl.pallas_call(
            functools.partial(dueling_kernel_t, matmul_dtype=matmul_dtype),
            out_shape=jax.ShapeDtypeStruct((A, b_pad), out_dtype),
            grid_spec=pltpu.PrefetchScalarGridSpec(
                num_scalar_prefetch=0,
                grid=grid,
                in_specs=[
                    pl.BlockSpec((F, tile_b), lambda i: (0, i)),     # x^T tile
                    _resident((H, F)),                               # W1^T (bf16)
                    _resident((H, 1)),                               # b1^T
                    _resident((A, H)),                               # W'^T (bf16)
                    _resident((A, 1)),                               # b'^T
                ],
                out_specs=pl.BlockSpec((A, tile_b), lambda i: (0, i)),
            ),
            compiler_params=pltpu.CompilerParams(
                dimension_semantics=("parallel",)),
        )(xt, w1t, b1t, wqt, bqt)
        return qt[:, :B].T

    # ---- batch-major path (small / moderate batches) ----
    gran = 8
    if tile_b is None:
        tile_b = _choose_tile_b(B, gran)
    assert tile_b % gran == 0 or tile_b == B, \
        "tile_b must be a multiple of 8 (sublane) or equal to B"
    b_pad = _round_up(B, tile_b)
    grid = (b_pad // tile_b,)

    xp = x if b_pad == B else jnp.pad(x, ((0, b_pad - B), (0, 0)))
    vpu_first_layer = (F <= 8) and (b_pad <= 128)
    # VPU path keeps W1 in f32 (no bf16 cast needed for the K=4 layer).
    w1_m = w1.astype(jnp.float32 if vpu_first_layer else matmul_dtype)
    wq_m = wq.astype(matmul_dtype)
    b1_f = b1.astype(jnp.float32)
    bq_f = bq.astype(jnp.float32)

    q = pl.pallas_call(
        functools.partial(dueling_kernel, matmul_dtype=matmul_dtype,
                          vpu_first_layer=vpu_first_layer),
        out_shape=jax.ShapeDtypeStruct((b_pad, A), out_dtype),
        grid_spec=pltpu.PrefetchScalarGridSpec(
            num_scalar_prefetch=0,
            grid=grid,
            in_specs=[
                pl.BlockSpec((tile_b, F), lambda i: (i, 0)),         # x tile
                _resident((F, H)),                                   # W1
                _resident((1, H)),                                   # b1
                _resident((H, A)),                                   # folded W'
                _resident((1, A)),                                   # folded b'
            ],
            out_specs=pl.BlockSpec((tile_b, A), lambda i: (i, 0)),
        ),
        compiler_params=pltpu.CompilerParams(
            dimension_semantics=("parallel",)),
    )(xp, w1_m, b1_f, wq_m, bq_f)
    return q[:B]


# --------------------------- reference & test -------------------------------

def _init_linear(key, fan_in, fan_out, dtype=jnp.float32):
    # Mimics PyTorch nn.Linear default init: U(-1/sqrt(fan_in), 1/sqrt(fan_in)).
    kw, kb = jax.random.split(key)
    bound = 1.0 / jnp.sqrt(jnp.asarray(fan_in, dtype))
    w = jax.random.uniform(kw, (fan_in, fan_out), dtype, minval=-bound, maxval=bound)
    b = jax.random.uniform(kb, (1, fan_out), dtype, minval=-bound, maxval=bound)
    return w, b


def reference_forward_f32(x, w1, b1, wv, bv, wa, ba):
    # Exact PyTorch semantics in f32.
    h = jax.nn.relu(x @ w1 + b1)
    v = h @ wv + bv
    a = h @ wa + ba
    return v + (a - jnp.mean(a, axis=-1, keepdims=True))


if __name__ == "__main__":
    # CartPole-like sizes: n_features=4, hidden=128, n_actions=2.
    n_features = 4
    hidden_dims = 128
    n_actions = 2

    key = jax.random.PRNGKey(0)
    k1, k2, k3, kx = jax.random.split(key, 4)
    w1, b1 = _init_linear(k1, n_features, hidden_dims)
    wv, bv = _init_linear(k2, hidden_dims, 1)
    wa, ba = _init_linear(k3, hidden_dims, n_actions)

    # Exercise all three kernel paths:
    #   B=8   -> small-batch VPU-first-layer path, single grid step
    #   B=160 -> batch-major MXU path, two 80-row tiles (ragged-friendly)
    #   B=300 -> lane-dense transposed path, padded to two 256-col tiles
    for batch in (8, 160, 300):
        kb = jax.random.fold_in(kx, batch)
        x = jax.random.normal(kb, (batch, n_features), jnp.float32)
        q = jax.block_until_ready(dueling_forward(x, w1, b1, wv, bv, wa, ba))
        assert q.shape == (batch, n_actions)
        q_ref = reference_forward_f32(x, w1, b1, wv, bv, wa, ba)
        # bf16 matmul operands + folded head => bf16-level noise vs exact f32.
        assert jnp.allclose(q, q_ref, atol=5e-2, rtol=5e-2), \
            f"mismatch vs f32 reference at B={batch}"

    print("KERNEL_OK")
</pallas_src>

<mosaic_0001>
module attributes {stable_mosaic.version = 11 : i64} {
  func.func @dueling_kernel(%arg0: i32, %arg1: memref<8x4xf32, #tpu.memory_space<vmem>>, %arg2: memref<4x128xf32, #tpu.memory_space<vmem>>, %arg3: memref<1x128xf32, #tpu.memory_space<vmem>>, %arg4: memref<128x2xbf16, #tpu.memory_space<vmem>>, %arg5: memref<1x2xf32, #tpu.memory_space<vmem>>, %arg6: memref<8x2xf32, #tpu.memory_space<vmem>>) attributes {dimension_semantics = [#tpu.dimension_semantics<parallel>], iteration_bounds = array<i64: 1>, scalar_prefetch = 0 : i64, scratch_operands = 0 : i64, tpu.core_type = #tpu.core_type<tc>, window_params = [{transform_indices = @transform_0, window_bounds = array<i64: 8, 4>}, {pipeline_mode = #tpu.pipeline_mode<synchronous>, transform_indices = @transform_1, window_bounds = array<i64: 4, 128>}, {pipeline_mode = #tpu.pipeline_mode<synchronous>, transform_indices = @transform_2, window_bounds = array<i64: 1, 128>}, {pipeline_mode = #tpu.pipeline_mode<synchronous>, transform_indices = @transform_3, window_bounds = array<i64: 128, 2>}, {pipeline_mode = #tpu.pipeline_mode<synchronous>, transform_indices = @transform_4, window_bounds = array<i64: 1, 2>}, {transform_indices = @transform_5, window_bounds = array<i64: 8, 2>}]} {
    %c0 = arith.constant 0 : index
    %c0_0 = arith.constant 0 : index
    %0 = vector.load %arg1[%c0, %c0_0] : memref<8x4xf32, #tpu.memory_space<vmem>>, vector<8x4xf32>
    %c0_1 = arith.constant 0 : index
    %c0_2 = arith.constant 0 : index
    %1 = vector.load %arg3[%c0_1, %c0_2] : memref<1x128xf32, #tpu.memory_space<vmem>>, vector<1x128xf32>
    %2 = vector.extract_strided_slice %0 {offsets = [0, 0], sizes = [8, 1], strides = [1, 1]} : vector<8x4xf32> to vector<8x1xf32>
    %c0_3 = arith.constant 0 : index
    %c0_4 = arith.constant 0 : index
    %3 = vector.load %arg2[%c0_3, %c0_4] : memref<4x128xf32, #tpu.memory_space<vmem>>, vector<1x128xf32>
    %4 = vector.broadcast %2 : vector<8x1xf32> to vector<8x128xf32>
    %5 = vector.broadcast %3 : vector<1x128xf32> to vector<8x128xf32>
    %6 = arith.mulf %4, %5 : vector<8x128xf32>
    %7 = vector.broadcast %1 : vector<1x128xf32> to vector<8x128xf32>
    %8 = arith.addf %7, %6 : vector<8x128xf32>
    %9 = vector.extract_strided_slice %0 {offsets = [0, 1], sizes = [8, 1], strides = [1, 1]} : vector<8x4xf32> to vector<8x1xf32>
    %c1 = arith.constant 1 : index
    %c0_5 = arith.constant 0 : index
    %10 = vector.load %arg2[%c1, %c0_5] : memref<4x128xf32, #tpu.memory_space<vmem>>, vector<1x128xf32>
    %11 = vector.broadcast %9 : vector<8x1xf32> to vector<8x128xf32>
    %12 = vector.broadcast %10 : vector<1x128xf32> to vector<8x128xf32>
    %13 = arith.mulf %11, %12 : vector<8x128xf32>
    %14 = arith.addf %8, %13 : vector<8x128xf32>
    %15 = vector.extract_strided_slice %0 {offsets = [0, 2], sizes = [8, 1], strides = [1, 1]} : vector<8x4xf32> to vector<8x1xf32>
    %c2 = arith.constant 2 : index
    %c0_6 = arith.constant 0 : index
    %16 = vector.load %arg2[%c2, %c0_6] : memref<4x128xf32, #tpu.memory_space<vmem>>, vector<1x128xf32>
    %17 = vector.broadcast %15 : vector<8x1xf32> to vector<8x128xf32>
    %18 = vector.broadcast %16 : vector<1x128xf32> to vector<8x128xf32>
    %19 = arith.mulf %17, %18 : vector<8x128xf32>
    %20 = arith.addf %14, %19 : vector<8x128xf32>
    %21 = vector.extract_strided_slice %0 {offsets = [0, 3], sizes = [8, 1], strides = [1, 1]} : vector<8x4xf32> to vector<8x1xf32>
    %c3 = arith.constant 3 : index
    %c0_7 = arith.constant 0 : index
    %22 = vector.load %arg2[%c3, %c0_7] : memref<4x128xf32, #tpu.memory_space<vmem>>, vector<1x128xf32>
    %23 = vector.broadcast %21 : vector<8x1xf32> to vector<8x128xf32>
    %24 = vector.broadcast %22 : vector<1x128xf32> to vector<8x128xf32>
    %25 = arith.mulf %23, %24 : vector<8x128xf32>
    %26 = arith.addf %20, %25 : vector<8x128xf32>
    %cst = arith.constant 0.000000e+00 : f32
    %27 = vector.broadcast %cst : f32 to vector<8x128xf32>
    %28 = arith.maximumf %26, %27 : vector<8x128xf32>
    %29 = arith.truncf %28 : vector<8x128xf32> to vector<8x128xbf16>
    %c0_8 = arith.constant 0 : index
    %c0_9 = arith.constant 0 : index
    %30 = vector.load %arg4[%c0_8, %c0_9] : memref<128x2xbf16, #tpu.memory_space<vmem>>, vector<128x2xbf16>
    %cst_10 = arith.constant dense<0.000000e+00> : vector<8x2xf32>
    %31 = tpu.matmul %29, %30, %cst_10 {dimension_numbers = #tpu.dot_dimension_numbers<[1], [0], [0], [1], [0, 0, 1, 1], [], []>} : vector<8x128xbf16>, vector<128x2xbf16>, vector<8x2xf32> -> vector<8x2xf32>
    %c0_11 = arith.constant 0 : index
    %c0_12 = arith.constant 0 : index
    %32 = vector.load %arg5[%c0_11, %c0_12] : memref<1x2xf32, #tpu.memory_space<vmem>>, vector<1x2xf32>
    %33 = vector.broadcast %32 : vector<1x2xf32> to vector<8x2xf32>
    %34 = arith.addf %31, %33 : vector<8x2xf32>
    %c0_13 = arith.constant 0 : index
    %c0_14 = arith.constant 0 : index
    %35 = vector.load %arg6[%c0_13, %c0_14] : memref<8x2xf32, #tpu.memory_space<vmem>>, vector<8x2xf32>
    tpu.vector_store %arg6[%c0_13, %c0_14], %34 {strides = array<i32>} : memref<8x2xf32, #tpu.memory_space<vmem>>, vector<8x2xf32>,
    return
  }
  func.func @transform_0(%arg0: i32) -> (i32, i32) {
    %c0_i32 = arith.constant 0 : i32
    %c0_i32_0 = arith.constant 0 : i32
    return %arg0, %c0_i32 : i32, i32
  }
  func.func @transform_1(%arg0: i32) -> (i32, i32) {
    %c0_i32 = arith.constant 0 : i32
    %c0_i32_0 = arith.constant 0 : i32
    %c0_i32_1 = arith.constant 0 : i32
    return %c0_i32, %c0_i32_0 : i32, i32
  }
  func.func @transform_2(%arg0: i32) -> (i32, i32) {
    %c0_i32 = arith.constant 0 : i32
    %c0_i32_0 = arith.constant 0 : i32
    %c0_i32_1 = arith.constant 0 : i32
    return %c0_i32, %c0_i32_0 : i32, i32
  }
  func.func @transform_3(%arg0: i32) -> (i32, i32) {
    %c0_i32 = arith.constant 0 : i32
    %c0_i32_0 = arith.constant 0 : i32
    %c0_i32_1 = arith.constant 0 : i32
    return %c0_i32, %c0_i32_0 : i32, i32
  }
  func.func @transform_4(%arg0: i32) -> (i32, i32) {
    %c0_i32 = arith.constant 0 : i32
    %c0_i32_0 = arith.constant 0 : i32
    %c0_i32_1 = arith.constant 0 : i32
    return %c0_i32, %c0_i32_0 : i32, i32
  }
  func.func @transform_5(%arg0: i32) -> (i32, i32) {
    %c0_i32 = arith.constant 0 : i32
    %c0_i32_0 = arith.constant 0 : i32
    return %arg0, %c0_i32 : i32, i32
  }
}

</mosaic_0001>

<llo_original>
// kernel: tpu_custom_call.1
$region0: #{tpu_custom_call.1}
  #allocation0 [shape = 'u32[]', space=smem, size = 0x4, offset = 0x4, fixed_abs, tag = 'smem constant byte address 0x4 - core index']
  #allocation1 [shape = 'u32[144,128]{1,0:T(1,128)}', space=vmem, size = 0x12000, scoped, tag = 'internal scratch']
  %s0 = inlined_call_operand.vmem [shape: f32[8,4], index: 0, kind: input, shape index: {}]
  %s1 = inlined_call_operand.vmem [shape: f32[4,128], index: 1, kind: input, shape index: {}]
  %s2 = inlined_call_operand.vmem [shape: f32[1,128], index: 2, kind: input, shape index: {}]
  %s3 = inlined_call_operand.vmem [shape: bf16[128,2], index: 3, kind: input, shape index: {}]
  %s4 = inlined_call_operand.vmem [shape: f32[1,2], index: 4, kind: input, shape index: {}]
  %s5 = inlined_call_operand.vmem [shape: f32[8,2], index: 5, kind: output, shape index: {}]
  %s6 = sld [smem:[#allocation0]]
  $region30: #{tpu_custom_call.1} parent=0
    _
  %s8 = ssub.s32 1, %s6
  %s9 = scalar_select 0, %s8, %s6
  // Predicated region
  $region2: #{tpu_custom_call.1} parent=0 // pred_check
    _
  $region3: #{tpu_custom_call.1} parent=0 // pred_check_branch
    %11 = sbr.rel (0) target = $region5
  $region4: #{tpu_custom_call.1} parent=0 // pred_region
    _
  $region5: #{tpu_custom_call.1} parent=0 // pred_fallthru
    _
  // Predicated region
  $region6: #{tpu_custom_call.1} parent=0 // pred_check
    _
  $region7: #{tpu_custom_call.1} parent=0 // pred_check_branch
    %13 = sbr.rel (0) target = $region9
  $region8: #{tpu_custom_call.1} parent=0 // pred_region
    _
  $region9: #{tpu_custom_call.1} parent=0 // pred_fallthru
    _
  // Predicated region
  $region10: #{tpu_custom_call.1} parent=0 // pred_check
    _
  $region11: #{tpu_custom_call.1} parent=0 // pred_check_branch
    %15 = sbr.rel (0) target = $region13
  $region12: #{tpu_custom_call.1} parent=0 // pred_region
    _
  $region13: #{tpu_custom_call.1} parent=0 // pred_fallthru
    _
  // Predicated region
  $region14: #{tpu_custom_call.1} parent=0 // pred_check
    _
  $region15: #{tpu_custom_call.1} parent=0 // pred_check_branch
    %17 = sbr.rel (0) target = $region17
  $region16: #{tpu_custom_call.1} parent=0 // pred_region
    _
  $region17: #{tpu_custom_call.1} parent=0 // pred_fallthru
    _
  // Predicated region
  $region18: #{tpu_custom_call.1} parent=0 // pred_check
    _
  $region19: #{tpu_custom_call.1} parent=0 // pred_check_branch
    %19 = sbr.rel (0) target = $region21
  $region20: #{tpu_custom_call.1} parent=0 // pred_region
    _
  $region21: #{tpu_custom_call.1} parent=0 // pred_fallthru
    _
  %v21 = vld [vmem:[%s0] sm:$0xff]
  %v22 = vld [vmem:[%s2] sm:$0x1]
  %v23 = vld [vmem:[%s1] sm:$0x1]
  %25 = vset.pattern.permute.xlu0 0
  %26 = vperm.xlu0 %25, %v21
  %v27 = vpop.permute.xlu0 %26
  %v29 = vlaneseq
  %v30 = vshrl.u32 %v29, 7
  %v31 = vsub.s32 0, %v30
  %v32 = vrot.slane %v23, %v31
  %v33 = vmul.f32 %v27, %v32
  %v35 = vlaneseq
  %v36 = vshrl.u32 %v35, 7
  %v37 = vsub.s32 0, %v36
  %v38 = vrot.slane %v22, %v37
  %v40 = vadd.f32 %v38, %v33
  %v41 = vld [vmem:[%s1 + $0x1] sm:$0x1]
  %42 = vset.pattern.permute.xlu0 1
  %43 = vperm.xlu0 %42, %v21
  %v44 = vpop.permute.xlu0 %43
  %v46 = vlaneseq
  %v47 = vshrl.u32 %v46, 7
  %v48 = vsub.s32 0, %v47
  %v49 = vrot.slane %v41, %v48
  %v50 = vmul.f32 %v44, %v49
  %v51 = vadd.f32 %v40, %v50
  %v52 = vld [vmem:[%s1 + $0x2] sm:$0x1]
  %53 = vset.pattern.permute.xlu0 2
  %54 = vperm.xlu0 %53, %v21
  %v55 = vpop.permute.xlu0 %54
  %v57 = vlaneseq
  %v58 = vshrl.u32 %v57, 7
  %v59 = vsub.s32 0, %v58
  %v60 = vrot.slane %v52, %v59
  %v61 = vmul.f32 %v55, %v60
  %v62 = vadd.f32 %v51, %v61
  %v63 = vld [vmem:[%s1 + $0x3] sm:$0x1]
  %64 = vset.pattern.permute.xlu0 3
  %65 = vperm.xlu0 %64, %v21
  %v66 = vpop.permute.xlu0 %65
  %v68 = vlaneseq
  %v69 = vshrl.u32 %v68, 7
  %v70 = vsub.s32 0, %v69
  %v71 = vrot.slane %v63, %v70
  %v72 = vmul.f32 %v66, %v71
  %v73 = vadd.f32 %v62, %v72
  %v74 = vmax.f32 %v73, 0.0
  %v75 = vpack.c.bf16 %v74, %v74
  %v76 = vld [vmem:[%s3] sm:$0xf]
  %v77 = vld [vmem:[%s3 + $0x4] sm:$0xf]
  %v78 = vld [vmem:[%s3 + $0x8] sm:$0xf]
  %v79 = vld [vmem:[%s3 + $0xc] sm:$0xf]
  %v80 = vld [vmem:[%s3 + $0x10] sm:$0xf]
  %v81 = vld [vmem:[%s3 + $0x14] sm:$0xf]
  %v82 = vld [vmem:[%s3 + $0x18] sm:$0xf]
  %v83 = vld [vmem:[%s3 + $0x1c] sm:$0xf]
  %v84 = vld [vmem:[%s3 + $0x20] sm:$0xf]
  %v85 = vld [vmem:[%s3 + $0x24] sm:$0xf]
  %v86 = vld [vmem:[%s3 + $0x28] sm:$0xf]
  %v87 = vld [vmem:[%s3 + $0x2c] sm:$0xf]
  %v88 = vld [vmem:[%s3 + $0x30] sm:$0xf]
  %v89 = vld [vmem:[%s3 + $0x34] sm:$0xf]
  %v90 = vld [vmem:[%s3 + $0x38] sm:$0xf]
  %v91 = vld [vmem:[%s3 + $0x3c] sm:$0xf]
  %v92 = vld [vmem:[%s4] sm:$0x1]
  %v94 = vlaneseq
  %v95 = vshrl.u32 %v94, 7
  %v96 = vsub.s32 0, %v95
  %v97 = vrot.slane %v92, %v96
  %v115 = vunpack.c.l.b16 %v76
  %v116 = vunpack.c.l.b16 %v77
  %v117 = vunpack.c.l.b16 %v78
  %v118 = vunpack.c.l.b16 %v79
  %v119 = vunpack.c.l.b16 %v80
  %v120 = vunpack.c.l.b16 %v81
  %v121 = vunpack.c.l.b16 %v82
  %v122 = vunpack.c.l.b16 %v83
  %v123 = vunpack.c.l.b16 %v84
  %v124 = vunpack.c.l.b16 %v85
  %v125 = vunpack.c.l.b16 %v86
  %v126 = vunpack.c.l.b16 %v87
  %v127 = vunpack.c.l.b16 %v88
  %v128 = vunpack.c.l.b16 %v89
  %v129 = vunpack.c.l.b16 %v90
  %v130 = vunpack.c.l.b16 %v91
  %v131 = vpack.c.b16 %v116, %v115
  %v132 = vpack.c.b16 %v118, %v117
  %v133 = vpack.c.b16 %v120, %v119
  %v134 = vpack.c.b16 %v122, %v121
  %v135 = vpack.c.b16 %v124, %v123
  %v136 = vpack.c.b16 %v126, %v125
  %v137 = vpack.c.b16 %v128, %v127
  %v138 = vpack.c.b16 %v130, %v129
  %147 = vmatprep.subr.bf16.mxu0 0
  %148 = vmatpush1.bf16.msra.mxu0 %v131
  %149 = vmatprep.subr.bf16.mxu0 0
  %150 = vmatpush1.bf16.msra.mxu0 %v132
  %151 = vmatprep.subr.bf16.mxu0 0
  %152 = vmatpush1.bf16.msra.mxu0 %v133
  %153 = vmatprep.subr.bf16.mxu0 0
  %154 = vmatpush1.bf16.msra.mxu0 %v134
  %155 = vmatprep.subr.bf16.mxu0 0
  %156 = vmatpush1.bf16.msra.mxu0 %v135
  %157 = vmatprep.subr.bf16.mxu0 0
  %158 = vmatpush1.bf16.msra.mxu0 %v136
  %159 = vmatprep.subr.bf16.mxu0 0
  %160 = vmatpush1.bf16.msra.mxu0 %v137
  %161 = vmatprep.subr.bf16.mxu0 0
  %162 = vmatpush1.bf16.msra.mxu0 %v138
  %163 = vmatprep.subr.bf16.mxu0 0
  %164 = vmatpush1.bf16.msra.mxu0 0
  %165 = vmatprep.subr.bf16.mxu0 0
  %166 = vmatpush1.bf16.msra.mxu0 0
  %167 = vmatprep.subr.bf16.mxu0 0
  %168 = vmatpush1.bf16.msra.mxu0 0
  %169 = vmatprep.subr.bf16.mxu0 0
  %170 = vmatpush1.bf16.msra.mxu0 0
  %171 = vmatprep.subr.bf16.mxu0 0
  %172 = vmatpush1.bf16.msra.mxu0 0
  %173 = vmatprep.subr.bf16.mxu0 0
  %174 = vmatpush1.bf16.msra.mxu0 0
  %175 = vmatprep.subr.bf16.mxu0 0
  %176 = vmatpush1.bf16.msra.mxu0 0
  %177 = vmatprep.subr.bf16.mxu0 0
  %178 = vmatpush1.bf16.msra.mxu0 0
  %179 = vmatprep.mubr.bf16.mxu0 0
  %180 = vmatmul.mubr.bf16.gmra.mrb[0].mxu0 %v75
  %v181 = vpop.f32.mrb[0].mxu0
  %v182 = vadd.f32 %v97, %v181
  %v183 = vpop.f32.mrb[0].mxu0
  %v184 = vpop.f32.mrb[0].mxu0
  %v185 = vpop.f32.mrb[0].mxu0
  %186 = vdwg.mxu0
  %vm187 = vcmask 15360
  %188 = vst.msk [vmem:[%s5] sm:$0xff] %vm187, %v182
  // Predicated region
  $region22: #{tpu_custom_call.1} parent=0 // pred_check
    _
  $region23: #{tpu_custom_call.1} parent=0 // pred_check_branch
    %190 = sbr.rel (0) target = $region25
  $region24: #{tpu_custom_call.1} parent=0 // pred_region
    _
  $region25: #{tpu_custom_call.1} parent=0 // pred_fallthru
    _
  // Predicated region
  $region26: #{tpu_custom_call.1} parent=0 // pred_check
    _
  $region27: #{tpu_custom_call.1} parent=0 // pred_check_branch
    %192 = sbr.rel (0) target = $region29
  $region28: #{tpu_custom_call.1} parent=0 // pred_region
    _
  $region29: #{tpu_custom_call.1} parent=0 // pred_fallthru
    _

</llo_original>
